<compile_context>
chip_gen: v5e
topology: v5e:2x2
jax: 0.10.0
libtpu: 0.0.40
codegen_flags: <defaults>
</compile_context>

<pallas_src>
import jax
import jax.numpy as jnp
from jax.experimental import pallas as pl
from jax.experimental.pallas import tpu as pltpu


def _round_up(x, m):
    return ((x + m - 1) // m) * m


def _choose_tile_rows(N, H, W, cin_p, cout_p, in_bytes, out_bytes,
                      vmem_budget_bytes=12 * 1024 * 1024):
    """Largest TH (divisor of H) whose double-buffered blocks + live f32 intermediates
    fit a conservative VMEM budget (safe under v7x's 32 MiB default scoped VMEM).
    Keeps >= 2 grid blocks when N == 1 so both v7x TensorCores get work."""
    max_th = H if N >= 2 else max(1, H // 2)
    best = None
    for th in range(1, max_th + 1):
        if H % th:
            continue
        if (th * W) % 8 != 0 and th != H:
            continue  # keep the flattened input block sublane-aligned
        in_blk = th * W * cin_p * in_bytes            # input block
        out_blk = 4 * th * W * cout_p * out_bytes     # output block (2x H, 2x W dup)
        live = 3 * th * W * cout_p * 4                # y / y2 / y3 f32 intermediates
        params = 2 * cin_p * cout_p * in_bytes + 8 * cout_p
        if 2 * in_blk + 2 * out_blk + live + params <= vmem_budget_bytes:
            best = th
    if best is None:
        best = H  # fall back to one full-height block (always spec-legal)
    return best


def _upsample_kernel(x_ref, w_ref, b_ref, o_ref):
    # x_ref: (1, TH*W, Cin_p)         compute dtype (bf16) -- TH spatial rows, flattened
    # w_ref: (Cin_p, Cout_p)          compute dtype, BN scale already folded in
    # b_ref: (1, Cout_p)              float32 fused BN bias
    # o_ref: (1, TH, 2, W, 2*Cout_p)  trailing (W, 2*Cout_p) block is lane-dense
    th = o_ref.shape[1]
    w_sz = o_ref.shape[3]

    x = x_ref[0]                                                      # (TH*W, Cin_p)
    # 1x1 conv as one MXU matmul with f32 accumulation.
    y = jnp.dot(x, w_ref[...], preferred_element_type=jnp.float32)    # (TH*W, Cout_p)
    y = y + b_ref[...]                                                # fused BN bias
    y = jnp.where(y > 0.0, y, 0.1 * y)                                # LeakyReLU(0.1)
    y = y.astype(o_ref.dtype)

    # Nearest-neighbour W-duplication on the lane axis: [y | y] -> (TH*W, 2*Cout_p).
    # Lane index s*Cout_p + c combined with the wrapper's row-major merge reproduces
    # exact nearest 2x along W.
    y2 = jnp.concatenate([y, y], axis=-1)
    # Expose the (TH, W) row structure; a free re-tiling when W is a sublane multiple.
    y3 = y2.reshape(th, w_sz, y2.shape[-1])

    # H-duplication: write the same slab to both duplicated output rows (unmasked vst;
    # the duplicate axis sits above the tiled trailing dims).
    o_ref[0, :, 0, :, :] = y3
    o_ref[0, :, 1, :, :] = y3


def upsample_forward_nhwc(x_nhwc, conv_w, bn_gamma, bn_beta, bn_mean, bn_var,
                          eps=1e-5, *, compute_dtype=jnp.bfloat16, out_dtype=None):
    """Fused 1x1 conv + BN(inference) + LeakyReLU(0.1) + nearest-2x upsample.
    x_nhwc: (N, H, W, Cin). Returns (N, 2H, 2W, Cout) in `out_dtype` (default: x dtype)."""
    N, H, W, Cin = x_nhwc.shape
    Cout = conv_w.shape[0]
    if out_dtype is None:
        out_dtype = x_nhwc.dtype
    in_bytes = jnp.dtype(compute_dtype).itemsize
    out_bytes = jnp.dtype(out_dtype).itemsize

    # ---- fold BatchNorm (inference) into the 1x1 conv ----
    scale = (bn_gamma / jnp.sqrt(bn_var + eps)).astype(jnp.float32)              # (Cout,)
    bias = (bn_beta.astype(jnp.float32) - bn_mean.astype(jnp.float32) * scale)   # (Cout,)
    w_io = jnp.transpose(conv_w.reshape(Cout, Cin).astype(jnp.float32), (1, 0))  # (Cin, Cout)
    w_io = w_io * scale[None, :]                                                 # fold scale

    # ---- pad channels to hardware-friendly sizes ----
    sub = 8 * (4 // in_bytes)                   # sublane packing of the compute dtype
    cin_p = max(sub, _round_up(Cin, sub))
    cout_p = max(128, _round_up(Cout, 128))     # lane-dense output channels
    if cin_p != Cin:
        w_io = jnp.pad(w_io, ((0, cin_p - Cin), (0, 0)))
    if cout_p != Cout:
        w_io = jnp.pad(w_io, ((0, 0), (0, cout_p - Cout)))
        bias = jnp.pad(bias, (0, cout_p - Cout))
    w_p = w_io.astype(compute_dtype)
    b_p = bias.reshape(1, cout_p)

    # ---- flatten spatial rows (free metadata reshape) and cast matmul input ----
    x_flat = x_nhwc.reshape(N, H * W, Cin)
    if cin_p != Cin:
        x_flat = jnp.pad(x_flat, ((0, 0), (0, 0), (0, cin_p - Cin)))
    x_flat = x_flat.astype(compute_dtype)

    th = _choose_tile_rows(N, H, W, cin_p, cout_p, in_bytes, out_bytes)
    grid = (N, H // th)

    out5 = pl.pallas_call(
        _upsample_kernel,
        out_shape=jax.ShapeDtypeStruct((N, H, 2, W, 2 * cout_p), out_dtype),
        grid_spec=pltpu.PrefetchScalarGridSpec(
            num_scalar_prefetch=0,
            grid=grid,
            in_specs=[
                pl.BlockSpec((1, th * W, cin_p), lambda n, t: (n, t, 0)),
                pl.BlockSpec((cin_p, cout_p), lambda n, t: (0, 0)),
                pl.BlockSpec((1, cout_p), lambda n, t: (0, 0)),
            ],
            out_specs=pl.BlockSpec((1, th, 2, W, 2 * cout_p),
                                   lambda n, t: (n, t, 0, 0, 0)),
        ),
        compiler_params=pltpu.CompilerParams(
            dimension_semantics=("parallel", "parallel"),
            vmem_limit_bytes=32 * 1024 * 1024,
        ),
    )(x_flat, w_p, b_p)

    # (N, H, 2, W, 2*Cp) row-major == (N, 2H, 2W, Cp): free nearest-neighbour merge.
    out_nhwc = out5.reshape(N, 2 * H, 2 * W, cout_p)
    if cout_p != Cout:
        out_nhwc = out_nhwc[..., :Cout]
    return out_nhwc


def upsample_forward(x_nchw, conv_w, bn_gamma, bn_beta, bn_mean, bn_var, eps=1e-5,
                     *, compute_dtype=jnp.bfloat16, out_dtype=None):
    """NCHW-facing wrapper matching the PyTorch module. In an NHWC pipeline prefer
    `upsample_forward_nhwc`: each transpose here is a full read+write of the (4x
    upsampled) tensor in XLA and costs about as much HBM traffic as the kernel itself."""
    x_nhwc = jnp.transpose(x_nchw, (0, 2, 3, 1))                      # (N, H, W, Cin)
    out_nhwc = upsample_forward_nhwc(x_nhwc, conv_w, bn_gamma, bn_beta, bn_mean, bn_var,
                                     eps, compute_dtype=compute_dtype, out_dtype=out_dtype)
    return jnp.transpose(out_nhwc, (0, 3, 1, 2))                      # back to NCHW


def _reference_forward(x_nchw, conv_w, bn_gamma, bn_beta, bn_mean, bn_var, eps=1e-5):
    # pure-JAX f32 reference of the same PyTorch semantics
    Cout, Cin = conv_w.shape[0], conv_w.shape[1]
    y = jnp.einsum('nihw,oi->nohw', x_nchw, conv_w.reshape(Cout, Cin),
                   precision=jax.lax.Precision.HIGHEST)
    scale = bn_gamma / jnp.sqrt(bn_var + eps)
    bias = bn_beta - bn_mean * scale
    y = y * scale[None, :, None, None] + bias[None, :, None, None]
    y = jnp.where(y > 0, y, 0.1 * y)
    y = jnp.repeat(jnp.repeat(y, 2, axis=2), 2, axis=3)               # nearest, scale 2
    return y


if __name__ == "__main__":
    # small deterministic setup: Upsample(in_channels=8, out_channels=4)
    N, Cin, Cout, H, W = 2, 8, 4, 16, 16
    key = jax.random.PRNGKey(0)
    k_x, k_w, k_g, k_b, k_m, k_v = jax.random.split(key, 6)

    x = jax.random.normal(k_x, (N, Cin, H, W), dtype=jnp.float32)
    conv_w = jax.random.normal(k_w, (Cout, Cin, 1, 1), dtype=jnp.float32) * 0.1
    bn_gamma = 1.0 + 0.1 * jax.random.normal(k_g, (Cout,), dtype=jnp.float32)
    bn_beta = 0.1 * jax.random.normal(k_b, (Cout,), dtype=jnp.float32)
    bn_mean = 0.1 * jax.random.normal(k_m, (Cout,), dtype=jnp.float32)
    bn_var = jax.random.uniform(k_v, (Cout,), dtype=jnp.float32, minval=0.5, maxval=1.5)

    out = upsample_forward(x, conv_w, bn_gamma, bn_beta, bn_mean, bn_var)
    out = jax.block_until_ready(out)

    ref = _reference_forward(x, conv_w, bn_gamma, bn_beta, bn_mean, bn_var)
    assert out.shape == (N, Cout, 2 * H, 2 * W), out.shape
    # bf16 matmul inputs (f32 accumulation) -> tolerance loosened vs the f32 reference
    max_err = float(jnp.abs(out - ref).max())
    assert max_err < 3e-2, max_err

    print("KERNEL_OK")
</pallas_src>

<mosaic_0001>
module attributes {stable_mosaic.version = 11 : i64} {
  func.func @_upsample_kernel(%arg0: i32, %arg1: i32, %arg2: memref<1x256x16xbf16, #tpu.memory_space<vmem>>, %arg3: memref<16x128xbf16, #tpu.memory_space<vmem>>, %arg4: memref<1x128xf32, #tpu.memory_space<vmem>>, %arg5: memref<1x16x2x16x256xf32, #tpu.memory_space<vmem>>) attributes {dimension_semantics = [#tpu.dimension_semantics<parallel>, #tpu.dimension_semantics<parallel>], iteration_bounds = array<i64: 2, 1>, scalar_prefetch = 0 : i64, scratch_operands = 0 : i64, tpu.core_type = #tpu.core_type<tc>, window_params = [{transform_indices = @transform_0, window_bounds = array<i64: 1, 256, 16>}, {pipeline_mode = #tpu.pipeline_mode<synchronous>, transform_indices = @transform_1, window_bounds = array<i64: 16, 128>}, {pipeline_mode = #tpu.pipeline_mode<synchronous>, transform_indices = @transform_2, window_bounds = array<i64: 1, 128>}, {transform_indices = @transform_3, window_bounds = array<i64: 1, 16, 2, 16, 256>}]} {
    %c0 = arith.constant 0 : index
    %c0_0 = arith.constant 0 : index
    %c0_1 = arith.constant 0 : index
    %0 = vector.load %arg2[%c0, %c0_0, %c0_1] : memref<1x256x16xbf16, #tpu.memory_space<vmem>>, vector<1x256x16xbf16>
    %1 = vector.shape_cast %0 : vector<1x256x16xbf16> to vector<256x16xbf16>
    %c0_2 = arith.constant 0 : index
    %c0_3 = arith.constant 0 : index
    %2 = vector.load %arg3[%c0_2, %c0_3] : memref<16x128xbf16, #tpu.memory_space<vmem>>, vector<16x128xbf16>
    %cst = arith.constant dense<0.000000e+00> : vector<256x128xf32>
    %3 = tpu.matmul %1, %2, %cst {dimension_numbers = #tpu.dot_dimension_numbers<[1], [0], [0], [1], [0, 0, 1, 1], [], []>} : vector<256x16xbf16>, vector<16x128xbf16>, vector<256x128xf32> -> vector<256x128xf32>
    %c0_4 = arith.constant 0 : index
    %c0_5 = arith.constant 0 : index
    %4 = vector.load %arg4[%c0_4, %c0_5] : memref<1x128xf32, #tpu.memory_space<vmem>>, vector<1x128xf32>
    %5 = vector.broadcast %4 : vector<1x128xf32> to vector<256x128xf32>
    %6 = arith.addf %3, %5 : vector<256x128xf32>
    %cst_6 = arith.constant 0.000000e+00 : f32
    %7 = vector.broadcast %cst_6 : f32 to vector<256x128xf32>
    %8 = arith.cmpf ogt, %6, %7 : vector<256x128xf32>
    %cst_7 = arith.constant 1.000000e-01 : f32
    %9 = vector.broadcast %cst_7 : f32 to vector<256x128xf32>
    %10 = arith.mulf %9, %6 : vector<256x128xf32>
    %11 = arith.select %8, %6, %10 : vector<256x128xi1>, vector<256x128xf32>
    %12 = tpu.concatenate %11, %11 in 1 : vector<256x128xf32>, vector<256x128xf32> -> vector<256x256xf32>
    %13 = vector.shape_cast %12 : vector<256x256xf32> to vector<16x16x256xf32>
    %c0_8 = arith.constant 0 : index
    %c0_9 = arith.constant 0 : index
    %c0_10 = arith.constant 0 : index
    %c0_11 = arith.constant 0 : index
    %c0_12 = arith.constant 0 : index
    %14 = vector.load %arg5[%c0_8, %c0_9, %c0_10, %c0_11, %c0_12] : memref<1x16x2x16x256xf32, #tpu.memory_space<vmem>>, vector<1x16x1x16x256xf32>
    %15 = vector.shape_cast %14 : vector<1x16x1x16x256xf32> to vector<16x16x256xf32>
    %16 = vector.shape_cast %13 : vector<16x16x256xf32> to vector<1x16x1x16x256xf32>
    tpu.vector_store %arg5[%c0_8, %c0_9, %c0_10, %c0_11, %c0_12], %16 {strides = array<i32>} : memref<1x16x2x16x256xf32, #tpu.memory_space<vmem>>, vector<1x16x1x16x256xf32>,
    %c0_13 = arith.constant 0 : index
    %c0_14 = arith.constant 0 : index
    %c1 = arith.constant 1 : index
    %c0_15 = arith.constant 0 : index
    %c0_16 = arith.constant 0 : index
    %17 = vector.load %arg5[%c0_13, %c0_14, %c1, %c0_15, %c0_16] : memref<1x16x2x16x256xf32, #tpu.memory_space<vmem>>, vector<1x16x1x16x256xf32>
    %18 = vector.shape_cast %17 : vector<1x16x1x16x256xf32> to vector<16x16x256xf32>
    %19 = vector.shape_cast %13 : vector<16x16x256xf32> to vector<1x16x1x16x256xf32>
    tpu.vector_store %arg5[%c0_13, %c0_14, %c1, %c0_15, %c0_16], %19 {strides = array<i32>} : memref<1x16x2x16x256xf32, #tpu.memory_space<vmem>>, vector<1x16x1x16x256xf32>,
    return
  }
  func.func @transform_0(%arg0: i32, %arg1: i32) -> (i32, i32, i32) {
    %c0_i32 = arith.constant 0 : i32
    %c0_i32_0 = arith.constant 0 : i32
    return %arg0, %arg1, %c0_i32 : i32, i32, i32
  }
  func.func @transform_1(%arg0: i32, %arg1: i32) -> (i32, i32) {
    %c0_i32 = arith.constant 0 : i32
    %c0_i32_0 = arith.constant 0 : i32
    %c0_i32_1 = arith.constant 0 : i32
    return %c0_i32, %c0_i32_0 : i32, i32
  }
  func.func @transform_2(%arg0: i32, %arg1: i32) -> (i32, i32) {
    %c0_i32 = arith.constant 0 : i32
    %c0_i32_0 = arith.constant 0 : i32
    %c0_i32_1 = arith.constant 0 : i32
    return %c0_i32, %c0_i32_0 : i32, i32
  }
  func.func @transform_3(%arg0: i32, %arg1: i32) -> (i32, i32, i32, i32, i32) {
    %c0_i32 = arith.constant 0 : i32
    %c0_i32_0 = arith.constant 0 : i32
    %c0_i32_1 = arith.constant 0 : i32
    %c0_i32_2 = arith.constant 0 : i32
    return %arg0, %arg1, %c0_i32, %c0_i32_0, %c0_i32_1 : i32, i32, i32, i32, i32
  }
}

</mosaic_0001>

<llo_original>
// kernel: tpu_custom_call.1
$region0: #{tpu_custom_call.1}
  #allocation0 [shape = 'u32[]', space=smem, size = 0x4, offset = 0x4, fixed_abs, tag = 'smem constant byte address 0x4 - core index']
  #allocation1 [shape = 'u32[72,128]{1,0:T(1,128)}', space=vmem, size = 0x9000, scoped, tag = 'internal scratch']
  %s0 = inlined_call_operand.vmem [shape: bf16[2,256,16], index: 0, kind: input, shape index: {}]
  %s1 = inlined_call_operand.vmem [shape: bf16[16,128], index: 1, kind: input, shape index: {}]
  %s2 = inlined_call_operand.vmem [shape: f32[1,128], index: 2, kind: input, shape index: {}]
  %s3 = inlined_call_operand.hbm [shape: f32[2,16,2,16,256], index: 3, kind: output, shape index: {}]
  %s4 = sld [smem:[#allocation0]]
  $region45: #{tpu_custom_call.1} parent=0
    _
  %s6 = ssub.s32 1, %s4
  %s7 = scalar_select 0, %s6, %s4
  $region1: #{tpu_custom_call.1} parent=0
    #allocation2 [shape = 'u8[1048576]{0}', space=vmem, size = 0x100000, scoped, tag = 'output window, operand 0']
    #allocation3 [shape = 's32[2]{0}', space=sflag, size = 0x8, scoped, tag = 'scoped memory for tpu_custom_call.1']
    %8 = vsyncpa [#allocation3], 0
    %s9 = scalar_lea.sflag [#allocation3], 1
    %10 = vsyncpa %s9, 0
    loop: start=0, step=1, limit=4
    $region2: #{tpu_custom_call.1} parent=1 // loop_pre_header
      _
    $region3: #{tpu_custom_call.1} parent=1 // loop_header
      %s12 = sphi 0, %s16
      %p13 = scmp.ge.s32.totalorder %s12, 4
      %s19 = sphi 0, %s31
      %s20 = sphi 0, %s27
      %s21 = sphi 0, %s19
      %s22 = sphi 0, %s20
      %s23 = sphi 0, %s21
      %s24 = sphi 0, %s22
      %s36 = sphi 0, %s38
      %s39 = sphi 0, %s36
      %s40 = sphi 0, %s39
      %s56 = sphi 0, %s40
      %s60 = sphi 0, %s60
      %s62 = sphi 0, %s60
      %s63 = sphi 0, %s62
      %s77 = sphi 0, %s63
      %s81 = sphi 0, %s81
      %s83 = sphi 0, %s81
      %s84 = sphi 0, %s83
      %s98 = sphi 0, %s84
      %s106 = sphi 0, %s108
      %s109 = sphi 0, %s106
      %s110 = sphi 0, %s109
      %s126 = sphi 0, %s110
    $region4: #{tpu_custom_call.1} parent=1 // loop_header_branch
      %15 = sbr.rel (%p13) target = $region8
    $region5: #{tpu_custom_call.1} parent=1 // loop_body
      %s17 = ssub.s32 %s12, 1
      %s18 = ssub.s32 %s12, 2
      %s25 = sadd.s32 1, %s20
      %p26 = scmp.ge.s32.totalorder %s25, 1
      %s27 = scalar_select %p26, 0, %s25
      %s28 = sadd.s32 1, %s19
      %s29 = scalar_select %p26, %s28, %s19
      %p30 = scmp.ge.s32.totalorder %s29, 2
      %s31 = scalar_select %p30, 0, %s29
      %s32 = ssub.s32 %s19, %s31
      %s33 = ssub.s32 %s20, %s27
      %s34 = sor.u32 %s32, %s33
      %p35 = scmp.eq.s32.totalorder %s34, 0
      %s37 = sadd.s32 %s36, 1
      %s38 = scalar_select %p35, %s36, %s37
      %p41 = pneg %p35
      %p42 = scmp.eq.s32.totalorder %s12, 1
      %p43 = por %p41, %p42
      %p44 = scmp.ne.s32.totalorder %s36, %s39
      %p45 = scmp.eq.s32.totalorder %s12, 0
      %p46 = por %p44, %p45
      %p47 = scmp.ne.s32.totalorder %s36, %s39
      %p48 = scmp.eq.s32.totalorder %s17, 1
      %p49 = por %p47, %p48
      %p50 = scmp.ne.s32.totalorder %s39, %s40
      %p51 = scmp.eq.s32.totalorder %s17, 0
      %p52 = por %p50, %p51
      %p53 = scmp.ne.s32.totalorder %s39, %s40
      %p54 = scmp.eq.s32.totalorder %s18, 1
      %p55 = por %p53, %p54
      %p57 = scmp.ne.s32.totalorder %s40, %s56
      %p58 = scmp.eq.s32.totalorder %s18, 0
      %p59 = por %p57, %p58
      %s61 = sadd.s32 %s60, 1
      %p64 = scmp.eq.s32.totalorder %s12, 1
      %p65 = scmp.ne.s32.totalorder %s60, %s62
      %p66 = scmp.eq.s32.totalorder %s12, 0
      %p67 = por %p65, %p66
      %p68 = scmp.ne.s32.totalorder %s60, %s62
      %p69 = scmp.eq.s32.totalorder %s17, 1
      %p70 = por %p68, %p69
      %p71 = scmp.ne.s32.totalorder %s62, %s63
      %p72 = scmp.eq.s32.totalorder %s17, 0
      %p73 = por %p71, %p72
      %p74 = scmp.ne.s32.totalorder %s62, %s63
      %p75 = scmp.eq.s32.totalorder %s18, 1
      %p76 = por %p74, %p75
      %p78 = scmp.ne.s32.totalorder %s63, %s77
      %p79 = scmp.eq.s32.totalorder %s18, 0
      %p80 = por %p78, %p79
      %s82 = sadd.s32 %s81, 1
      %p85 = scmp.eq.s32.totalorder %s12, 1
      %p86 = scmp.ne.s32.totalorder %s81, %s83
      %p87 = scmp.eq.s32.totalorder %s12, 0
      %p88 = por %p86, %p87
      %p89 = scmp.ne.s32.totalorder %s81, %s83
      %p90 = scmp.eq.s32.totalorder %s17, 1
      %p91 = por %p89, %p90
      %p92 = scmp.ne.s32.totalorder %s83, %s84
      %p93 = scmp.eq.s32.totalorder %s17, 0
      %p94 = por %p92, %p93
      %p95 = scmp.ne.s32.totalorder %s83, %s84
      %p96 = scmp.eq.s32.totalorder %s18, 1
      %p97 = por %p95, %p96
      %p99 = scmp.ne.s32.totalorder %s84, %s98
      %p100 = scmp.eq.s32.totalorder %s18, 0
      %p101 = por %p99, %p100
      %s102 = ssub.s32 %s19, %s31
      %s103 = ssub.s32 %s20, %s27
      %s104 = sor.u32 %s102, %s103
      %p105 = scmp.eq.s32.totalorder %s104, 0
      %s107 = sadd.s32 %s106, 1
      %s108 = scalar_select %p105, %s106, %s107
      %p111 = pneg %p105
      %p112 = scmp.eq.s32.totalorder %s12, 1
      %p113 = por %p111, %p112
      %p114 = scmp.ne.s32.totalorder %s106, %s109
      %p115 = scmp.eq.s32.totalorder %s12, 0
      %p116 = por %p114, %p115
      %p117 = scmp.ne.s32.totalorder %s106, %s109
      %p118 = scmp.eq.s32.totalorder %s17, 1
      %p119 = por %p117, %p118
      %p120 = scmp.ne.s32.totalorder %s109, %s110
      %p121 = scmp.eq.s32.totalorder %s17, 0
      %p122 = por %p120, %p121
      %p123 = scmp.ne.s32.totalorder %s109, %s110
      %p124 = scmp.eq.s32.totalorder %s18, 1
      %p125 = por %p123, %p124
      %p127 = scmp.ne.s32.totalorder %s110, %s126
      %p128 = scmp.eq.s32.totalorder %s18, 0
      %p129 = por %p127, %p128
      %p130 = scmp.le.s32.totalorder 1, %s12
      %p131 = scmp.lt.s32.totalorder %s12, 3
      %p132 = pnand %p130, %p131
      %p133 = pneg %p132
      // Predicated region
      $region9: #{tpu_custom_call.1} parent=5 // pred_check
        _
      $region10: #{tpu_custom_call.1} parent=5 // pred_check_branch
        %135 = sbr.rel (%p132) target = $region12
      $region11: #{tpu_custom_call.1} parent=5 // pred_region
        %s136 = ssub.s32 %s12, 1
        // Predicated region
        $region13: #{tpu_custom_call.1} parent=11 // pred_check
          %p137 = pneg %p73
        $region14: #{tpu_custom_call.1} parent=11 // pred_check_branch
          %139 = sbr.rel (%p137) target = $region16
        $region15: #{tpu_custom_call.1} parent=11 // pred_region
          _
        $region16: #{tpu_custom_call.1} parent=11 // pred_fallthru
          _
        // Predicated region
        $region17: #{tpu_custom_call.1} parent=11 // pred_check
          %p140 = pneg %p94
        $region18: #{tpu_custom_call.1} parent=11 // pred_check_branch
          %142 = sbr.rel (%p140) target = $region20
        $region19: #{tpu_custom_call.1} parent=11 // pred_region
          _
        $region20: #{tpu_custom_call.1} parent=11 // pred_fallthru
          _
      $region12: #{tpu_custom_call.1} parent=5 // pred_fallthru
        _
      %p143 = scmp.lt.s32.totalorder %s12, 2
      // Predicated region
      $region21: #{tpu_custom_call.1} parent=5 // pred_check
        %p144 = pneg %p143
      $region22: #{tpu_custom_call.1} parent=5 // pred_check_branch
        %146 = sbr.rel (%p144) target = $region24
      $region23: #{tpu_custom_call.1} parent=5 // pred_region
        // Predicated region
        $region25: #{tpu_custom_call.1} parent=23 // pred_check
          %p147 = pneg %p46
        $region26: #{tpu_custom_call.1} parent=23 // pred_check_branch
          %149 = sbr.rel (%p147) target = $region28
        $region27: #{tpu_custom_call.1} parent=23 // pred_region
          %s150 = smul.u32 32, %s20
          %p151 = scmp.lt.s32.totalorder %s19, 1
          %s152 = scalar_select %p151, %s19, 1
          %p153 = scmp.lt.s32.totalorder %s150, 31
          %s154 = scalar_select %p153, %s150, 31
          %s155 = smul.addr %s152, 32
          %s156 = sadd.s32 %s154, %s155
          %s157 = smul.addr %s156, 4
          %s158 = scalar_lea.vmem %s0, %s157
          %s159 = smul.u32 32, %s20
        $region28: #{tpu_custom_call.1} parent=23 // pred_fallthru
          _
      $region24: #{tpu_custom_call.1} parent=5 // pred_fallthru
        _
      %p160 = scmp.le.s32.totalorder 1, %s12
      %p161 = scmp.lt.s32.totalorder %s12, 3
      %p162 = pnand %p160, %p161
      %p163 = pneg %p162
      // Predicated region
      $region29: #{tpu_custom_call.1} parent=5 // pred_check
        _
      $region30: #{tpu_custom_call.1} parent=5 // pred_check_branch
        %165 = sbr.rel (%p162) target = $region32
      $region31: #{tpu_custom_call.1} parent=5 // pred_region
        %s166 = ssub.s32 %s12, 1
        %s167 = smul.u32 32, %s22
        %p168 = scmp.lt.s32.totalorder %s21, 1
        %s169 = scalar_select %p168, %s21, 1
        %p170 = scmp.lt.s32.totalorder %s167, 31
        %s171 = scalar_select %p170, %s167, 31
        %s172 = smul.addr %s169, 32
        %s173 = sadd.s32 %s171, %s172
        %s174 = smul.addr %s173, 4
        %s175 = scalar_lea.vmem %s0, %s174
        %p176 = pneg %p52
        %p177 = pneg %p49
        %p178 = pneg %p73
        %p179 = pneg %p70
        %p180 = pneg %p94
        %p181 = pneg %p91
        %p182 = pneg %p122
        %p183 = pneg %p119
        %s184 = sand.u32 %s109, 1
        %s185 = scalar_lea.sflag [#allocation3], %s184
        %s186 = sand.u32 %s109, 1
        %s187 = smul.addr %s186, 1024
        %s188 = scalar_lea.vmem [#allocation2], %s187
        %s189 = smul.u32 32, %s22
        %p190 = scmp.lt.s32.totalorder %s21, 1
        %s191 = scalar_select %p190, %s21, 1
        %p192 = scmp.lt.s32.totalorder %s189, 31
        %s193 = scalar_select %p192, %s189, 31
        %s194 = smul.addr %s191, 32
        %s195 = sadd.s32 %s193, %s194
        %s196 = smul.addr %s195, 4
        %s197 = scalar_lea.vmem %s0, %s196
        %s198 = smul.u32 32, %s22
        %s199 = smul.u32 16, %s22
        %v201 = vld [vmem:[%s197] sm:$0xf]
        %v202 = vld [vmem:[%s197 + $0x4] sm:$0xf]
        %v203 = vld [vmem:[%s197 + $0x8] sm:$0xf]
        %v204 = vld [vmem:[%s197 + $0xc] sm:$0xf]
        %v205 = vld [vmem:[%s197 + $0x10] sm:$0xf]
        %v206 = vld [vmem:[%s197 + $0x14] sm:$0xf]
        %v207 = vld [vmem:[%s197 + $0x18] sm:$0xf]
        %v208 = vld [vmem:[%s197 + $0x1c] sm:$0xf]
        %v209 = vld [vmem:[%s197 + $0x20] sm:$0xf]
        %v210 = vld [vmem:[%s197 + $0x24] sm:$0xf]
        %v211 = vld [vmem:[%s197 + $0x28] sm:$0xf]
        %v212 = vld [vmem:[%s197 + $0x2c] sm:$0xf]
        %v213 = vld [vmem:[%s197 + $0x30] sm:$0xf]
        %v214 = vld [vmem:[%s197 + $0x34] sm:$0xf]
        %v215 = vld [vmem:[%s197 + $0x38] sm:$0xf]
        %v216 = vld [vmem:[%s197 + $0x3c] sm:$0xf]
        %v217 = vld [vmem:[%s197 + $0x40] sm:$0xf]
        %v218 = vld [vmem:[%s197 + $0x44] sm:$0xf]
        %v219 = vld [vmem:[%s197 + $0x48] sm:$0xf]
        %v220 = vld [vmem:[%s197 + $0x4c] sm:$0xf]
        %v221 = vld [vmem:[%s197 + $0x50] sm:$0xf]
        %v222 = vld [vmem:[%s197 + $0x54] sm:$0xf]
        %v223 = vld [vmem:[%s197 + $0x58] sm:$0xf]
        %v224 = vld [vmem:[%s197 + $0x5c] sm:$0xf]
        %v225 = vld [vmem:[%s197 + $0x60] sm:$0xf]
        %v226 = vld [vmem:[%s197 + $0x64] sm:$0xf]
        %v227 = vld [vmem:[%s197 + $0x68] sm:$0xf]
        %v228 = vld [vmem:[%s197 + $0x6c] sm:$0xf]
        %v229 = vld [vmem:[%s197 + $0x70] sm:$0xf]
        %v230 = vld [vmem:[%s197 + $0x74] sm:$0xf]
        %v231 = vld [vmem:[%s197 + $0x78] sm:$0xf]
        %v232 = vld [vmem:[%s197 + $0x7c] sm:$0xf]
        %v233 = vld [vmem:[%s1] sm:$0xf]
        %v234 = vld [vmem:[%s1 + $0x4] sm:$0xf]
        %v235 = vld [vmem:[%s2] sm:$0x1]
        %v237 = vperm.slane %v235, 0
        %v271 = vunpack.c.l.b16 %v201
        %v272 = vunpack.c.l.b16 %v202
        %v273 = vunpack.c.l.b16 %v203
        %v274 = vunpack.c.l.b16 %v204
        %v275 = vunpack.c.l.b16 %v205
        %v276 = vunpack.c.l.b16 %v206
        %v277 = vunpack.c.l.b16 %v207
        %v278 = vunpack.c.l.b16 %v208
        %v279 = vunpack.c.l.b16 %v209
        %v280 = vunpack.c.l.b16 %v210
        %v281 = vunpack.c.l.b16 %v211
        %v282 = vunpack.c.l.b16 %v212
        %v283 = vunpack.c.l.b16 %v213
        %v284 = vunpack.c.l.b16 %v214
        %v285 = vunpack.c.l.b16 %v215
        %v286 = vunpack.c.l.b16 %v216
        %v287 = vunpack.c.l.b16 %v217
        %v288 = vunpack.c.l.b16 %v218
        %v289 = vunpack.c.l.b16 %v219
        %v290 = vunpack.c.l.b16 %v220
        %v291 = vunpack.c.l.b16 %v221
        %v292 = vunpack.c.l.b16 %v222
        %v293 = vunpack.c.l.b16 %v223
        %v294 = vunpack.c.l.b16 %v224
        %v295 = vunpack.c.l.b16 %v225
        %v296 = vunpack.c.l.b16 %v226
        %v297 = vunpack.c.l.b16 %v227
        %v298 = vunpack.c.l.b16 %v228
        %v299 = vunpack.c.l.b16 %v229
        %v300 = vunpack.c.l.b16 %v230
        %v301 = vunpack.c.l.b16 %v231
        %v302 = vunpack.c.l.b16 %v232
        %v303 = vpack.c.b16 %v272, %v271
        %v304 = vpack.c.b16 %v274, %v273
        %v305 = vpack.c.b16 %v276, %v275
        %v306 = vpack.c.b16 %v278, %v277
        %v307 = vpack.c.b16 %v280, %v279
        %v308 = vpack.c.b16 %v282, %v281
        %v309 = vpack.c.b16 %v284, %v283
        %v310 = vpack.c.b16 %v286, %v285
        %v311 = vpack.c.b16 %v288, %v287
        %v312 = vpack.c.b16 %v290, %v289
        %v313 = vpack.c.b16 %v292, %v291
        %v314 = vpack.c.b16 %v294, %v293
        %v315 = vpack.c.b16 %v296, %v295
        %v316 = vpack.c.b16 %v298, %v297
        %v317 = vpack.c.b16 %v300, %v299
        %v318 = vpack.c.b16 %v302, %v301
        %v321 = vunpack.c.l.b16 %v233
        %v322 = vunpack.c.l.b16 %v234
        %v323 = vpack.c.b16 %v322, %v321
        %vm325 = vcmask 130048
        %v327 = vsel %vm325, %v303, 0
        %v330 = vsel %vm325, %v304, 0
        %v333 = vsel %vm325, %v305, 0
        %v336 = vsel %vm325, %v306, 0
        %v339 = vsel %vm325, %v307, 0
        %v342 = vsel %vm325, %v308, 0
        %v345 = vsel %vm325, %v309, 0
        %v348 = vsel %vm325, %v310, 0
        %v351 = vsel %vm325, %v311, 0
        %v354 = vsel %vm325, %v312, 0
        %v357 = vsel %vm325, %v313, 0
        %v360 = vsel %vm325, %v314, 0
        %v363 = vsel %vm325, %v315, 0
        %v366 = vsel %vm325, %v316, 0
        %v369 = vsel %vm325, %v317, 0
        %v372 = vsel %vm325, %v318, 0
        %374 = vmatpush.bf16.msra.mxu0 0
        %375 = vmatpush.bf16.msra.mxu0 0
        %376 = vmatpush.bf16.msra.mxu0 0
        %377 = vmatpush.bf16.msra.mxu0 0
        %378 = vmatpush.bf16.msra.mxu0 0
        %379 = vmatpush.bf16.msra.mxu0 0
        %380 = vmatpush.bf16.msra.mxu0 0
        %381 = vmatpush.bf16.msra.mxu0 %v323
        %382 = vmatmul.bf16.gmra.mxu0 %v327
        %v383 = vpop.f32.mrf.mxu0
        %v384 = vadd.f32 %v237, %v383
        %v385 = vpop.f32.mrf.mxu0
        %v386 = vadd.f32 %v237, %v385
        %387 = vmatmul.bf16.gmra.mxu0 %v330
        %v388 = vpop.f32.mrf.mxu0
        %v389 = vadd.f32 %v237, %v388
        %v390 = vpop.f32.mrf.mxu0
        %v391 = vadd.f32 %v237, %v390
        %392 = vmatmul.bf16.gmra.mxu0 %v333
        %v393 = vpop.f32.mrf.mxu0
        %v394 = vadd.f32 %v237, %v393
        %v395 = vpop.f32.mrf.mxu0
        %v396 = vadd.f32 %v237, %v395
        %397 = vmatmul.bf16.gmra.mxu0 %v336
        %v398 = vpop.f32.mrf.mxu0
        %v399 = vadd.f32 %v237, %v398
        %v400 = vpop.f32.mrf.mxu0
        %v401 = vadd.f32 %v237, %v400
        %402 = vmatmul.bf16.gmra.mxu0 %v339
        %v403 = vpop.f32.mrf.mxu0
        %v404 = vadd.f32 %v237, %v403
        %v405 = vpop.f32.mrf.mxu0
        %v406 = vadd.f32 %v237, %v405
        %407 = vmatmul.bf16.gmra.mxu0 %v342
        %v408 = vpop.f32.mrf.mxu0
        %v409 = vadd.f32 %v237, %v408
        %v410 = vpop.f32.mrf.mxu0
        %v411 = vadd.f32 %v237, %v410
        %412 = vmatmul.bf16.gmra.mxu0 %v345
        %v413 = vpop.f32.mrf.mxu0
        %v414 = vadd.f32 %v237, %v413
        %v415 = vpop.f32.mrf.mxu0
        %v416 = vadd.f32 %v237, %v415
        %417 = vmatmul.bf16.gmra.mxu0 %v348
        %v418 = vpop.f32.mrf.mxu0
        %v419 = vadd.f32 %v237, %v418
        %v420 = vpop.f32.mrf.mxu0
        %v421 = vadd.f32 %v237, %v420
        %422 = vmatmul.bf16.gmra.mxu0 %v351
        %v423 = vpop.f32.mrf.mxu0
        %v424 = vadd.f32 %v237, %v423
        %v425 = vpop.f32.mrf.mxu0
        %v426 = vadd.f32 %v237, %v425
        %427 = vmatmul.bf16.gmra.mxu0 %v354
        %v428 = vpop.f32.mrf.mxu0
        %v429 = vadd.f32 %v237, %v428
        %v430 = vpop.f32.mrf.mxu0
        %v431 = vadd.f32 %v237, %v430
        %432 = vmatmul.bf16.gmra.mxu0 %v357
        %v433 = vpop.f32.mrf.mxu0
        %v434 = vadd.f32 %v237, %v433
        %v435 = vpop.f32.mrf.mxu0
        %v436 = vadd.f32 %v237, %v435
        %437 = vmatmul.bf16.gmra.mxu0 %v360
        %v438 = vpop.f32.mrf.mxu0
        %v439 = vadd.f32 %v237, %v438
        %v440 = vpop.f32.mrf.mxu0
        %v441 = vadd.f32 %v237, %v440
        %442 = vmatmul.bf16.gmra.mxu0 %v363
        %v443 = vpop.f32.mrf.mxu0
        %v444 = vadd.f32 %v237, %v443
        %v445 = vpop.f32.mrf.mxu0
        %v446 = vadd.f32 %v237, %v445
        %447 = vmatmul.bf16.gmra.mxu0 %v366
        %v448 = vpop.f32.mrf.mxu0
        %v449 = vadd.f32 %v237, %v448
        %v450 = vpop.f32.mrf.mxu0
        %v451 = vadd.f32 %v237, %v450
        %452 = vmatmul.bf16.gmra.mxu0 %v369
        %v453 = vpop.f32.mrf.mxu0
        %v454 = vadd.f32 %v237, %v453
        %v455 = vpop.f32.mrf.mxu0
        %v456 = vadd.f32 %v237, %v455
        %457 = vmatmul.bf16.gmra.mxu0 %v372
        %v458 = vpop.f32.mrf.mxu0
        %v459 = vadd.f32 %v237, %v458
        %v460 = vpop.f32.mrf.mxu0
        %v461 = vadd.f32 %v237, %v460
        %462 = vdwg.mxu0
        %vm463 = vcmp.gt.f32.partialorder %v384, 0.0
        %vm464 = vcmp.gt.f32.partialorder %v386, 0.0
        %vm465 = vcmp.gt.f32.partialorder %v389, 0.0
        %vm466 = vcmp.gt.f32.partialorder %v391, 0.0
        %vm467 = vcmp.gt.f32.partialorder %v394, 0.0
        %vm468 = vcmp.gt.f32.partialorder %v396, 0.0
        %vm469 = vcmp.gt.f32.partialorder %v399, 0.0
        %vm470 = vcmp.gt.f32.partialorder %v401, 0.0
        %vm471 = vcmp.gt.f32.partialorder %v404, 0.0
        %vm472 = vcmp.gt.f32.partialorder %v406, 0.0
        %vm473 = vcmp.gt.f32.partialorder %v409, 0.0
        %vm474 = vcmp.gt.f32.partialorder %v411, 0.0
        %vm475 = vcmp.gt.f32.partialorder %v414, 0.0
        %vm476 = vcmp.gt.f32.partialorder %v416, 0.0
        %vm477 = vcmp.gt.f32.partialorder %v419, 0.0
        %vm478 = vcmp.gt.f32.partialorder %v421, 0.0
        %vm479 = vcmp.gt.f32.partialorder %v424, 0.0
        %vm480 = vcmp.gt.f32.partialorder %v426, 0.0
        %vm481 = vcmp.gt.f32.partialorder %v429, 0.0
        %vm482 = vcmp.gt.f32.partialorder %v431, 0.0
        %vm483 = vcmp.gt.f32.partialorder %v434, 0.0
        %vm484 = vcmp.gt.f32.partialorder %v436, 0.0
        %vm485 = vcmp.gt.f32.partialorder %v439, 0.0
        %vm486 = vcmp.gt.f32.partialorder %v441, 0.0
        %vm487 = vcmp.gt.f32.partialorder %v444, 0.0
        %vm488 = vcmp.gt.f32.partialorder %v446, 0.0
        %vm489 = vcmp.gt.f32.partialorder %v449, 0.0
        %vm490 = vcmp.gt.f32.partialorder %v451, 0.0
        %vm491 = vcmp.gt.f32.partialorder %v454, 0.0
        %vm492 = vcmp.gt.f32.partialorder %v456, 0.0
        %vm493 = vcmp.gt.f32.partialorder %v459, 0.0
        %vm494 = vcmp.gt.f32.partialorder %v461, 0.0
        %v495 = vmul.f32 %v384, 0.1
        %v496 = vmul.f32 %v386, 0.1
        %v497 = vmul.f32 %v389, 0.1
        %v498 = vmul.f32 %v391, 0.1
        %v499 = vmul.f32 %v394, 0.1
        %v500 = vmul.f32 %v396, 0.1
        %v501 = vmul.f32 %v399, 0.1
        %v502 = vmul.f32 %v401, 0.1
        %v503 = vmul.f32 %v404, 0.1
        %v504 = vmul.f32 %v406, 0.1
        %v505 = vmul.f32 %v409, 0.1
        %v506 = vmul.f32 %v411, 0.1
        %v507 = vmul.f32 %v414, 0.1
        %v508 = vmul.f32 %v416, 0.1
        %v509 = vmul.f32 %v419, 0.1
        %v510 = vmul.f32 %v421, 0.1
        %v511 = vmul.f32 %v424, 0.1
        %v512 = vmul.f32 %v426, 0.1
        %v513 = vmul.f32 %v429, 0.1
        %v514 = vmul.f32 %v431, 0.1
        %v515 = vmul.f32 %v434, 0.1
        %v516 = vmul.f32 %v436, 0.1
        %v517 = vmul.f32 %v439, 0.1
        %v518 = vmul.f32 %v441, 0.1
        %v519 = vmul.f32 %v444, 0.1
        %v520 = vmul.f32 %v446, 0.1
        %v521 = vmul.f32 %v449, 0.1
        %v522 = vmul.f32 %v451, 0.1
        %v523 = vmul.f32 %v454, 0.1
        %v524 = vmul.f32 %v456, 0.1
        %v525 = vmul.f32 %v459, 0.1
        %v526 = vmul.f32 %v461, 0.1
        %v527 = vsel %vm463, %v384, %v495
        %v528 = vsel %vm464, %v386, %v496
        %v529 = vsel %vm465, %v389, %v497
        %v530 = vsel %vm466, %v391, %v498
        %v531 = vsel %vm467, %v394, %v499
        %v532 = vsel %vm468, %v396, %v500
        %v533 = vsel %vm469, %v399, %v501
        %v534 = vsel %vm470, %v401, %v502
        %v535 = vsel %vm471, %v404, %v503
        %v536 = vsel %vm472, %v406, %v504
        %v537 = vsel %vm473, %v409, %v505
        %v538 = vsel %vm474, %v411, %v506
        %v539 = vsel %vm475, %v414, %v507
        %v540 = vsel %vm476, %v416, %v508
        %v541 = vsel %vm477, %v419, %v509
        %v542 = vsel %vm478, %v421, %v510
        %v543 = vsel %vm479, %v424, %v511
        %v544 = vsel %vm480, %v426, %v512
        %v545 = vsel %vm481, %v429, %v513
        %v546 = vsel %vm482, %v431, %v514
        %v547 = vsel %vm483, %v434, %v515
        %v548 = vsel %vm484, %v436, %v516
        %v549 = vsel %vm485, %v439, %v517
        %v550 = vsel %vm486, %v441, %v518
        %v551 = vsel %vm487, %v444, %v519
        %v552 = vsel %vm488, %v446, %v520
        %v553 = vsel %vm489, %v449, %v521
        %v554 = vsel %vm490, %v451, %v522
        %v555 = vsel %vm491, %v454, %v523
        %v556 = vsel %vm492, %v456, %v524
        %v557 = vsel %vm493, %v459, %v525
        %v558 = vsel %vm494, %v461, %v526
        %559 = vst [vmem:[%s188] sm:$0xff] %v527
        %560 = vst [vmem:[%s188 + $0x8] sm:$0xff] %v527
        %561 = vst [vmem:[%s188 + $0x10] sm:$0xff] %v528
        %562 = vst [vmem:[%s188 + $0x18] sm:$0xff] %v528
        %563 = vst [vmem:[%s188 + $0x40] sm:$0xff] %v529
        %564 = vst [vmem:[%s188 + $0x48] sm:$0xff] %v529
        %565 = vst [vmem:[%s188 + $0x50] sm:$0xff] %v530
        %566 = vst [vmem:[%s188 + $0x58] sm:$0xff] %v530
        %567 = vst [vmem:[%s188 + $0x80] sm:$0xff] %v531
        %568 = vst [vmem:[%s188 + $0x88] sm:$0xff] %v531
        %569 = vst [vmem:[%s188 + $0x90] sm:$0xff] %v532
        %570 = vst [vmem:[%s188 + $0x98] sm:$0xff] %v532
        %571 = vst [vmem:[%s188 + $0xc0] sm:$0xff] %v533
        %572 = vst [vmem:[%s188 + $0xc8] sm:$0xff] %v533
        %573 = vst [vmem:[%s188 + $0xd0] sm:$0xff] %v534
        %574 = vst [vmem:[%s188 + $0xd8] sm:$0xff] %v534
        %575 = vst [vmem:[%s188 + $0x100] sm:$0xff] %v535
        %576 = vst [vmem:[%s188 + $0x108] sm:$0xff] %v535
        %577 = vst [vmem:[%s188 + $0x110] sm:$0xff] %v536
        %578 = vst [vmem:[%s188 + $0x118] sm:$0xff] %v536
        %579 = vst [vmem:[%s188 + $0x140] sm:$0xff] %v537
        %580 = vst [vmem:[%s188 + $0x148] sm:$0xff] %v537
        %581 = vst [vmem:[%s188 + $0x150] sm:$0xff] %v538
        %582 = vst [vmem:[%s188 + $0x158] sm:$0xff] %v538
        %583 = vst [vmem:[%s188 + $0x180] sm:$0xff] %v539
        %584 = vst [vmem:[%s188 + $0x188] sm:$0xff] %v539
        %585 = vst [vmem:[%s188 + $0x190] sm:$0xff] %v540
        %586 = vst [vmem:[%s188 + $0x198] sm:$0xff] %v540
        %587 = vst [vmem:[%s188 + $0x1c0] sm:$0xff] %v541
        %588 = vst [vmem:[%s188 + $0x1c8] sm:$0xff] %v541
        %589 = vst [vmem:[%s188 + $0x1d0] sm:$0xff] %v542
        %590 = vst [vmem:[%s188 + $0x1d8] sm:$0xff] %v542
        %591 = vst [vmem:[%s188 + $0x200] sm:$0xff] %v543
        %592 = vst [vmem:[%s188 + $0x208] sm:$0xff] %v543
        %593 = vst [vmem:[%s188 + $0x210] sm:$0xff] %v544
        %594 = vst [vmem:[%s188 + $0x218] sm:$0xff] %v544
        %595 = vst [vmem:[%s188 + $0x240] sm:$0xff] %v545
        %596 = vst [vmem:[%s188 + $0x248] sm:$0xff] %v545
        %597 = vst [vmem:[%s188 + $0x250] sm:$0xff] %v546
        %598 = vst [vmem:[%s188 + $0x258] sm:$0xff] %v546
        %599 = vst [vmem:[%s188 + $0x280] sm:$0xff] %v547
        %600 = vst [vmem:[%s188 + $0x288] sm:$0xff] %v547
        %601 = vst [vmem:[%s188 + $0x290] sm:$0xff] %v548
        %602 = vst [vmem:[%s188 + $0x298] sm:$0xff] %v548
        %603 = vst [vmem:[%s188 + $0x2c0] sm:$0xff] %v549
        %604 = vst [vmem:[%s188 + $0x2c8] sm:$0xff] %v549
        %605 = vst [vmem:[%s188 + $0x2d0] sm:$0xff] %v550
        %606 = vst [vmem:[%s188 + $0x2d8] sm:$0xff] %v550
        %607 = vst [vmem:[%s188 + $0x300] sm:$0xff] %v551
        %608 = vst [vmem:[%s188 + $0x308] sm:$0xff] %v551
        %609 = vst [vmem:[%s188 + $0x310] sm:$0xff] %v552
        %610 = vst [vmem:[%s188 + $0x318] sm:$0xff] %v552
        %611 = vst [vmem:[%s188 + $0x340] sm:$0xff] %v553
        %612 = vst [vmem:[%s188 + $0x348] sm:$0xff] %v553
        %613 = vst [vmem:[%s188 + $0x350] sm:$0xff] %v554
        %614 = vst [vmem:[%s188 + $0x358] sm:$0xff] %v554
        %615 = vst [vmem:[%s188 + $0x380] sm:$0xff] %v555
        %616 = vst [vmem:[%s188 + $0x388] sm:$0xff] %v555
        %617 = vst [vmem:[%s188 + $0x390] sm:$0xff] %v556
        %618 = vst [vmem:[%s188 + $0x398] sm:$0xff] %v556
        %619 = vst [vmem:[%s188 + $0x3c0] sm:$0xff] %v557
        %620 = vst [vmem:[%s188 + $0x3c8] sm:$0xff] %v557
        %621 = vst [vmem:[%s188 + $0x3d0] sm:$0xff] %v558
        %622 = vst [vmem:[%s188 + $0x3d8] sm:$0xff] %v558
        %s623 = scalar_lea.vmem %s188, 32 [#allocation2]
        %624 = vst [vmem:[%s623] sm:$0xff] %v527
        %625 = vst [vmem:[%s623 + $0x8] sm:$0xff] %v527
        %626 = vst [vmem:[%s623 + $0x10] sm:$0xff] %v528
        %627 = vst [vmem:[%s623 + $0x18] sm:$0xff] %v528
        %628 = vst [vmem:[%s623 + $0x40] sm:$0xff] %v529
        %629 = vst [vmem:[%s623 + $0x48] sm:$0xff] %v529
        %630 = vst [vmem:[%s623 + $0x50] sm:$0xff] %v530
        %631 = vst [vmem:[%s623 + $0x58] sm:$0xff] %v530
        %632 = vst [vmem:[%s623 + $0x80] sm:$0xff] %v531
        %633 = vst [vmem:[%s623 + $0x88] sm:$0xff] %v531
        %634 = vst [vmem:[%s623 + $0x90] sm:$0xff] %v532
        %635 = vst [vmem:[%s623 + $0x98] sm:$0xff] %v532
        %636 = vst [vmem:[%s623 + $0xc0] sm:$0xff] %v533
        %637 = vst [vmem:[%s623 + $0xc8] sm:$0xff] %v533
        %638 = vst [vmem:[%s623 + $0xd0] sm:$0xff] %v534
        %639 = vst [vmem:[%s623 + $0xd8] sm:$0xff] %v534
        %640 = vst [vmem:[%s623 + $0x100] sm:$0xff] %v535
        %641 = vst [vmem:[%s623 + $0x108] sm:$0xff] %v535
        %642 = vst [vmem:[%s623 + $0x110] sm:$0xff] %v536
        %643 = vst [vmem:[%s623 + $0x118] sm:$0xff] %v536
        %644 = vst [vmem:[%s623 + $0x140] sm:$0xff] %v537
        %645 = vst [vmem:[%s623 + $0x148] sm:$0xff] %v537
        %646 = vst [vmem:[%s623 + $0x150] sm:$0xff] %v538
        %647 = vst [vmem:[%s623 + $0x158] sm:$0xff] %v538
        %648 = vst [vmem:[%s623 + $0x180] sm:$0xff] %v539
        %649 = vst [vmem:[%s623 + $0x188] sm:$0xff] %v539
        %650 = vst [vmem:[%s623 + $0x190] sm:$0xff] %v540
        %651 = vst [vmem:[%s623 + $0x198] sm:$0xff] %v540
        %652 = vst [vmem:[%s623 + $0x1c0] sm:$0xff] %v541
        %653 = vst [vmem:[%s623 + $0x1c8] sm:$0xff] %v541
        %654 = vst [vmem:[%s623 + $0x1d0] sm:$0xff] %v542
        %655 = vst [vmem:[%s623 + $0x1d8] sm:$0xff] %v542
        %656 = vst [vmem:[%s623 + $0x200] sm:$0xff] %v543
        %657 = vst [vmem:[%s623 + $0x208] sm:$0xff] %v543
        %658 = vst [vmem:[%s623 + $0x210] sm:$0xff] %v544
        %659 = vst [vmem:[%s623 + $0x218] sm:$0xff] %v544
        %660 = vst [vmem:[%s623 + $0x240] sm:$0xff] %v545
        %661 = vst [vmem:[%s623 + $0x248] sm:$0xff] %v545
        %662 = vst [vmem:[%s623 + $0x250] sm:$0xff] %v546
        %663 = vst [vmem:[%s623 + $0x258] sm:$0xff] %v546
        %664 = vst [vmem:[%s623 + $0x280] sm:$0xff] %v547
        %665 = vst [vmem:[%s623 + $0x288] sm:$0xff] %v547
        %666 = vst [vmem:[%s623 + $0x290] sm:$0xff] %v548
        %667 = vst [vmem:[%s623 + $0x298] sm:$0xff] %v548
        %668 = vst [vmem:[%s623 + $0x2c0] sm:$0xff] %v549
        %669 = vst [vmem:[%s623 + $0x2c8] sm:$0xff] %v549
        %670 = vst [vmem:[%s623 + $0x2d0] sm:$0xff] %v550
        %671 = vst [vmem:[%s623 + $0x2d8] sm:$0xff] %v550
        %672 = vst [vmem:[%s623 + $0x300] sm:$0xff] %v551
        %673 = vst [vmem:[%s623 + $0x308] sm:$0xff] %v551
        %674 = vst [vmem:[%s623 + $0x310] sm:$0xff] %v552
        %675 = vst [vmem:[%s623 + $0x318] sm:$0xff] %v552
        %676 = vst [vmem:[%s623 + $0x340] sm:$0xff] %v553
        %677 = vst [vmem:[%s623 + $0x348] sm:$0xff] %v553
        %678 = vst [vmem:[%s623 + $0x350] sm:$0xff] %v554
        %679 = vst [vmem:[%s623 + $0x358] sm:$0xff] %v554
        %680 = vst [vmem:[%s623 + $0x380] sm:$0xff] %v555
        %681 = vst [vmem:[%s623 + $0x388] sm:$0xff] %v555
        %682 = vst [vmem:[%s623 + $0x390] sm:$0xff] %v556
        %683 = vst [vmem:[%s623 + $0x398] sm:$0xff] %v556
        %684 = vst [vmem:[%s623 + $0x3c0] sm:$0xff] %v557
        %685 = vst [vmem:[%s623 + $0x3c8] sm:$0xff] %v557
        %686 = vst [vmem:[%s623 + $0x3d0] sm:$0xff] %v558
        %687 = vst [vmem:[%s623 + $0x3d8] sm:$0xff] %v558
        %s688 = sand.u32 %s109, 1
        %s689 = scalar_lea.sflag [#allocation3], %s688
        %s690 = sand.u32 %s109, 1
        %s691 = smul.addr %s690, 1024
        %s692 = scalar_lea.vmem [#allocation2], %s691
        // Predicated region
        $region33: #{tpu_custom_call.1} parent=31 // pred_check
          %p693 = pneg %p119
        $region34: #{tpu_custom_call.1} parent=31 // pred_check_branch
          %695 = sbr.rel (%p693) target = $region36
        $region35: #{tpu_custom_call.1} parent=31 // pred_region
          %s696 = smul.u32 16, %s22
          %698 = vsyncadd %s689, 0
          %s699 = smul.addr %s696, 8
          %s700 = smul.addr %s21, 128
          %s701 = sadd.s32 %s699, %s700
          %s702 = smul.addr %s701, 8
          %s703 = scalar_lea.hbm %s3, %s702
          %s704 = sshll.u32 %s692, 4
          %s705 = int_to_ptr.vmem [resolvable:$true] %s704
          %s706 = sshll.u32 %s703, 4
          %s707 = int_to_ptr.hbm [resolvable:$true] %s706
          %712 = dma.vmem_to_hbm [thread:$0]  %s705, 16384, %s707, %s689, 256, 256, 16
        $region36: #{tpu_custom_call.1} parent=31 // pred_fallthru
          _
      $region32: #{tpu_custom_call.1} parent=5 // pred_fallthru
        _
      %p713 = scmp.le.s32.totalorder 2, %s12
      // Predicated region
      $region37: #{tpu_custom_call.1} parent=5 // pred_check
        %p714 = pneg %p713
      $region38: #{tpu_custom_call.1} parent=5 // pred_check_branch
        %716 = sbr.rel (%p714) target = $region40
      $region39: #{tpu_custom_call.1} parent=5 // pred_region
        %s717 = ssub.s32 %s12, 2
        // Predicated region
        $region41: #{tpu_custom_call.1} parent=39 // pred_check
          %p718 = pneg %p125
        $region42: #{tpu_custom_call.1} parent=39 // pred_check_branch
          %720 = sbr.rel (%p718) target = $region44
        $region43: #{tpu_custom_call.1} parent=39 // pred_region
          %s721 = sand.u32 %s110, 1
          %s722 = scalar_lea.sflag [#allocation3], %s721
          %s723 = sand.u32 %s110, 1
          %s724 = smul.addr %s723, 1024
          %s725 = scalar_lea.vmem [#allocation2], %s724
          %727 = dma.done %s722, 16384
        $region44: #{tpu_custom_call.1} parent=39 // pred_fallthru
          _
      $region40: #{tpu_custom_call.1} parent=5 // pred_fallthru
        _
    $region6: #{tpu_custom_call.1} parent=1 // loop_footer
      %s16 = sadd.s32 1, %s12
    $region7: #{tpu_custom_call.1} parent=1 // loop_footer_branch
      %11 = sbr.rel target = $region3
    $region8: #{tpu_custom_call.1} parent=1 // loop_exit
      _
    %728 = vsyncpa [#allocation3], 1
    %s729 = scalar_lea.sflag [#allocation3], 1
    %730 = vsyncpa %s729, 1

</llo_original>
